<compile_context>
chip_gen: v6e
topology: v6e:2x2x1
jax: 0.10.0
libtpu: 0.0.40
codegen_flags: <defaults>
</compile_context>

<pallas_src>
import jax
import jax.numpy as jnp
from jax.experimental import pallas as pl
from jax.experimental.pallas import tpu as pltpu

LANE = 128          # TPU lane width
HPAD = 128          # hidden 24 -> 128 (lane-dense for the two 128-K layers)


def _round_up(x, m):
    return ((x + m - 1) // m) * m


def dqn_kernel(x_ref, w1_ref, w23_ref, b_ref, o_ref):
    # Static views into the stacked parameter slabs (zero-cost).
    b1 = b_ref[0:1, :]
    b2 = b_ref[1:2, :]
    b3 = b_ref[2:3, :]
    w2 = w23_ref[0:HPAD, :]
    w3 = w23_ref[HPAD:2 * HPAD, :]

    # fc1 + relu, fully in f32 (K = state_size is tiny; avoids quantizing raw states).
    h1 = jnp.dot(x_ref[...], w1_ref[...], preferred_element_type=jnp.float32) + b1
    h1 = jnp.maximum(h1, 0.0).astype(jnp.bfloat16)

    # fc2 + relu : bf16 MXU matmul, f32 accumulation / epilogue.
    h2 = jnp.dot(h1, w2, preferred_element_type=jnp.float32) + b2
    h2 = jnp.maximum(h2, 0.0).astype(jnp.bfloat16)

    # fc3 (no activation).  Compute on the 128-wide padded w3, then store only
    # the real action_size columns -> output HBM bytes drop 64x vs a full slab.
    q = jnp.dot(h2, w3, preferred_element_type=jnp.float32) + b3
    o_ref[...] = q[:, : o_ref.shape[1]].astype(o_ref.dtype)


def dqn_forward(x, dev_params, action_size, *, tile_m=1024):
    """x: (B, state_size) f32.  dev_params: packed device-layout params."""
    B, state_size = x.shape

    # Tile count first (>= 2 when B >= 16 so v7x's two TensorCores both engage),
    # then size TM to evenly cover B -> batch padding stays under 8 rows.
    n_tiles = pl.cdiv(B, tile_m)
    if B >= 16:
        n_tiles = max(2, n_tiles)
    TM = _round_up(pl.cdiv(B, n_tiles), 8)
    B_pad = TM * n_tiles
    if B_pad != B:
        x = jnp.pad(x, ((0, B_pad - B), (0, 0)))

    const = lambda i: (0, 0)   # weights/biases VMEM-resident across the batch grid
    out = pl.pallas_call(
        dqn_kernel,
        out_shape=jax.ShapeDtypeStruct((B_pad, action_size), jnp.float32),
        grid=(n_tiles,),
        in_specs=[
            pl.BlockSpec((TM, state_size), lambda i: (i, 0)),   # x tile
            pl.BlockSpec((state_size, HPAD), const),            # w1 (f32)
            pl.BlockSpec((2 * HPAD, HPAD), const),              # [w2; w3] (bf16)
            pl.BlockSpec((8, HPAD), const),                     # [b1; b2; b3; 0...] (f32)
        ],
        out_specs=pl.BlockSpec((TM, action_size), lambda i: (i, 0)),
        compiler_params=pltpu.CompilerParams(
            dimension_semantics=("parallel",),                  # shard batch across v7x TCs
        ),
    )(x, dev_params["w1"], dev_params["w23"], dev_params["b"])
    return out[:B]


def init_params(key, state_size, action_size, hidden=24):
    """PyTorch nn.Linear default init: U(-1/sqrt(fan_in), +1/sqrt(fan_in)).

    Weights stored as (in_features, out_features) so y = x @ W + b.
    """
    def linear(k, fan_in, fan_out):
        kw, kb = jax.random.split(k)
        bound = 1.0 / jnp.sqrt(fan_in)
        w = jax.random.uniform(kw, (fan_in, fan_out), jnp.float32, -bound, bound)
        b = jax.random.uniform(kb, (1, fan_out), jnp.float32, -bound, bound)
        return w, b

    k1, k2, k3 = jax.random.split(key, 3)
    w1, b1 = linear(k1, state_size, hidden)
    w2, b2 = linear(k2, hidden, hidden)
    w3, b3 = linear(k3, hidden, action_size)
    return {"w1": w1, "b1": b1, "w2": w2, "b2": b2, "w3": w3, "b3": b3}


def prepare_device_params(p):
    """Pack params into the kernel layout:
       w1  : (state_size, 128) f32   (hidden zero-padded to lane width)
       w23 : (256, 128)        bf16  (rows 0-127 = w2, rows 128-255 = w3; zero-padded)
       b   : (8, 128)          f32   (row 0 = b1, row 1 = b2, row 2 = b3; rest zero)
    Padded columns/rows are exact zeros, so they never leak into real outputs.
    """
    state_size, hidden = p["w1"].shape
    action_size = p["w3"].shape[1]

    def pad2(a, rows, cols, dtype):
        out = jnp.zeros((rows, cols), dtype)
        return out.at[: a.shape[0], : a.shape[1]].set(a.astype(dtype))

    w1 = pad2(p["w1"], state_size, HPAD, jnp.float32)
    w23 = jnp.concatenate(
        [pad2(p["w2"], HPAD, HPAD, jnp.bfloat16),
         pad2(p["w3"], HPAD, HPAD, jnp.bfloat16)], axis=0)
    b = jnp.zeros((8, HPAD), jnp.float32)
    b = b.at[0, :hidden].set(p["b1"][0].astype(jnp.float32))
    b = b.at[1, :hidden].set(p["b2"][0].astype(jnp.float32))
    b = b.at[2, :action_size].set(p["b3"][0].astype(jnp.float32))
    return {"w1": w1, "w23": w23, "b": b}


def dqn_reference(x, p):
    """Pure-JAX f32 reference on the unpadded params."""
    h1 = jnp.maximum(x @ p["w1"] + p["b1"], 0.0)
    h2 = jnp.maximum(h1 @ p["w2"] + p["b2"], 0.0)
    return h2 @ p["w3"] + p["b3"]


if __name__ == "__main__":
    key = jax.random.PRNGKey(0)
    k_params, k_x = jax.random.split(key)

    batch, state_size, action_size = 8, 4, 2
    params = init_params(k_params, state_size, action_size)
    dev_params = prepare_device_params(params)
    x = jax.random.normal(k_x, (batch, state_size), jnp.float32)

    out = dqn_forward(x, dev_params, action_size)
    out = jax.block_until_ready(out)

    ref = dqn_reference(x, params)
    assert out.shape == (batch, action_size)
    # bf16 weights in layers 2/3 vs f32 reference -> bf16-level tolerance.
    assert jnp.allclose(out, ref, atol=2e-2, rtol=2e-2), (
        float(jnp.max(jnp.abs(out - ref)))
    )

    print("KERNEL_OK")
</pallas_src>

<mosaic_0001>
module attributes {stable_mosaic.version = 11 : i64} {
  func.func @dqn_kernel(%arg0: i32, %arg1: memref<8x4xf32, #tpu.memory_space<vmem>>, %arg2: memref<4x128xf32, #tpu.memory_space<vmem>>, %arg3: memref<256x128xbf16, #tpu.memory_space<vmem>>, %arg4: memref<8x128xf32, #tpu.memory_space<vmem>>, %arg5: memref<8x2xf32, #tpu.memory_space<vmem>>) attributes {dimension_semantics = [#tpu.dimension_semantics<parallel>], iteration_bounds = array<i64: 1>, scalar_prefetch = 0 : i64, scratch_operands = 0 : i64, tpu.core_type = #tpu.core_type<tc>, window_params = [{transform_indices = @transform_0, window_bounds = array<i64: 8, 4>}, {pipeline_mode = #tpu.pipeline_mode<synchronous>, transform_indices = @transform_1, window_bounds = array<i64: 4, 128>}, {pipeline_mode = #tpu.pipeline_mode<synchronous>, transform_indices = @transform_2, window_bounds = array<i64: 256, 128>}, {pipeline_mode = #tpu.pipeline_mode<synchronous>, transform_indices = @transform_3, window_bounds = array<i64: 8, 128>}, {transform_indices = @transform_4, window_bounds = array<i64: 8, 2>}]} {
    %c0 = arith.constant 0 : index
    %c0_0 = arith.constant 0 : index
    %0 = vector.load %arg4[%c0, %c0_0] : memref<8x128xf32, #tpu.memory_space<vmem>>, vector<1x128xf32>
    %c1 = arith.constant 1 : index
    %c0_1 = arith.constant 0 : index
    %1 = vector.load %arg4[%c1, %c0_1] : memref<8x128xf32, #tpu.memory_space<vmem>>, vector<1x128xf32>
    %c2 = arith.constant 2 : index
    %c0_2 = arith.constant 0 : index
    %2 = vector.load %arg4[%c2, %c0_2] : memref<8x128xf32, #tpu.memory_space<vmem>>, vector<1x128xf32>
    %c0_3 = arith.constant 0 : index
    %c0_4 = arith.constant 0 : index
    %3 = vector.load %arg3[%c0_3, %c0_4] : memref<256x128xbf16, #tpu.memory_space<vmem>>, vector<128x128xbf16>
    %c128 = arith.constant 128 : index
    %c0_5 = arith.constant 0 : index
    %4 = vector.load %arg3[%c128, %c0_5] : memref<256x128xbf16, #tpu.memory_space<vmem>>, vector<128x128xbf16>
    %c0_6 = arith.constant 0 : index
    %c0_7 = arith.constant 0 : index
    %5 = vector.load %arg1[%c0_6, %c0_7] : memref<8x4xf32, #tpu.memory_space<vmem>>, vector<8x4xf32>
    %c0_8 = arith.constant 0 : index
    %c0_9 = arith.constant 0 : index
    %6 = vector.load %arg2[%c0_8, %c0_9] : memref<4x128xf32, #tpu.memory_space<vmem>>, vector<4x128xf32>
    %cst = arith.constant dense<0.000000e+00> : vector<8x128xf32>
    %7 = tpu.matmul %5, %6, %cst {dimension_numbers = #tpu.dot_dimension_numbers<[1], [0], [0], [1], [0, 0, 1, 1], [], []>} : vector<8x4xf32>, vector<4x128xf32>, vector<8x128xf32> -> vector<8x128xf32>
    %8 = vector.broadcast %0 : vector<1x128xf32> to vector<8x128xf32>
    %9 = arith.addf %7, %8 : vector<8x128xf32>
    %cst_10 = arith.constant 0.000000e+00 : f32
    %10 = vector.broadcast %cst_10 : f32 to vector<8x128xf32>
    %11 = arith.maximumf %9, %10 : vector<8x128xf32>
    %12 = arith.truncf %11 : vector<8x128xf32> to vector<8x128xbf16>
    %cst_11 = arith.constant dense<0.000000e+00> : vector<8x128xf32>
    %13 = tpu.matmul %12, %3, %cst_11 {dimension_numbers = #tpu.dot_dimension_numbers<[1], [0], [0], [1], [0, 0, 1, 1], [], []>} : vector<8x128xbf16>, vector<128x128xbf16>, vector<8x128xf32> -> vector<8x128xf32>
    %14 = vector.broadcast %1 : vector<1x128xf32> to vector<8x128xf32>
    %15 = arith.addf %13, %14 : vector<8x128xf32>
    %cst_12 = arith.constant 0.000000e+00 : f32
    %16 = vector.broadcast %cst_12 : f32 to vector<8x128xf32>
    %17 = arith.maximumf %15, %16 : vector<8x128xf32>
    %18 = arith.truncf %17 : vector<8x128xf32> to vector<8x128xbf16>
    %cst_13 = arith.constant dense<0.000000e+00> : vector<8x128xf32>
    %19 = tpu.matmul %18, %4, %cst_13 {dimension_numbers = #tpu.dot_dimension_numbers<[1], [0], [0], [1], [0, 0, 1, 1], [], []>} : vector<8x128xbf16>, vector<128x128xbf16>, vector<8x128xf32> -> vector<8x128xf32>
    %20 = vector.broadcast %2 : vector<1x128xf32> to vector<8x128xf32>
    %21 = arith.addf %19, %20 : vector<8x128xf32>
    %22 = vector.extract_strided_slice %21 {offsets = [0, 0], sizes = [8, 2], strides = [1, 1]} : vector<8x128xf32> to vector<8x2xf32>
    %c0_14 = arith.constant 0 : index
    %c0_15 = arith.constant 0 : index
    %23 = vector.load %arg5[%c0_14, %c0_15] : memref<8x2xf32, #tpu.memory_space<vmem>>, vector<8x2xf32>
    tpu.vector_store %arg5[%c0_14, %c0_15], %22 {strides = array<i32>} : memref<8x2xf32, #tpu.memory_space<vmem>>, vector<8x2xf32>,
    return
  }
  func.func @transform_0(%arg0: i32) -> (i32, i32) {
    %c0_i32 = arith.constant 0 : i32
    %c0_i32_0 = arith.constant 0 : i32
    return %arg0, %c0_i32 : i32, i32
  }
  func.func @transform_1(%arg0: i32) -> (i32, i32) {
    %c0_i32 = arith.constant 0 : i32
    %c0_i32_0 = arith.constant 0 : i32
    %c0_i32_1 = arith.constant 0 : i32
    return %c0_i32, %c0_i32_0 : i32, i32
  }
  func.func @transform_2(%arg0: i32) -> (i32, i32) {
    %c0_i32 = arith.constant 0 : i32
    %c0_i32_0 = arith.constant 0 : i32
    %c0_i32_1 = arith.constant 0 : i32
    return %c0_i32, %c0_i32_0 : i32, i32
  }
  func.func @transform_3(%arg0: i32) -> (i32, i32) {
    %c0_i32 = arith.constant 0 : i32
    %c0_i32_0 = arith.constant 0 : i32
    %c0_i32_1 = arith.constant 0 : i32
    return %c0_i32, %c0_i32_0 : i32, i32
  }
  func.func @transform_4(%arg0: i32) -> (i32, i32) {
    %c0_i32 = arith.constant 0 : i32
    %c0_i32_0 = arith.constant 0 : i32
    return %arg0, %c0_i32 : i32, i32
  }
}

</mosaic_0001>

<llo_original>
// kernel: tpu_custom_call.1
$region0: #{tpu_custom_call.1}
  #allocation0 [shape = 'u32[]', space=smem, size = 0x4, offset = 0x4, fixed_abs, tag = 'smem constant byte address 0x4 - core index']
  #allocation1 [shape = 'u32[144,128]{1,0:T(1,128)}', space=vmem, size = 0x12000, scoped, tag = 'internal scratch']
  %s0 = inlined_call_operand.vmem [shape: f32[8,4], index: 0, kind: input, shape index: {}]
  %s1 = inlined_call_operand.vmem [shape: f32[4,128], index: 1, kind: input, shape index: {}]
  %s2 = inlined_call_operand.hbm [shape: bf16[256,128], index: 2, kind: input, shape index: {}]
  %s3 = inlined_call_operand.vmem [shape: f32[8,128], index: 3, kind: input, shape index: {}]
  %s4 = inlined_call_operand.vmem [shape: f32[8,2], index: 4, kind: output, shape index: {}]
  %s5 = sld [smem:[#allocation0]]
  $region30: #{tpu_custom_call.1} parent=0
    _
  %s7 = ssub.s32 1, %s5
  %s8 = scalar_select 0, %s7, %s5
  $region1: #{tpu_custom_call.1} parent=0
    #allocation2 [shape = 'u8[65536]{0}', space=vmem, size = 0x10000, scoped, tag = 'input window, operand 2, single buffered']
    #allocation3 [shape = 's32[1]{0}', space=sflag, size = 0x4, scoped, tag = 'scoped memory for tpu_custom_call.1']
    %9 = vsyncpa [#allocation3], 0
    // Predicated region
    $region2: #{tpu_custom_call.1} parent=1 // pred_check
      _
    $region3: #{tpu_custom_call.1} parent=1 // pred_check_branch
      %11 = sbr.rel (0) target = $region5
    $region4: #{tpu_custom_call.1} parent=1 // pred_region
      _
    $region5: #{tpu_custom_call.1} parent=1 // pred_fallthru
      _
    // Predicated region
    $region6: #{tpu_custom_call.1} parent=1 // pred_check
      _
    $region7: #{tpu_custom_call.1} parent=1 // pred_check_branch
      %13 = sbr.rel (0) target = $region9
    $region8: #{tpu_custom_call.1} parent=1 // pred_region
      _
    $region9: #{tpu_custom_call.1} parent=1 // pred_fallthru
      _
    // Predicated region
    $region10: #{tpu_custom_call.1} parent=1 // pred_check
      _
    $region11: #{tpu_custom_call.1} parent=1 // pred_check_branch
      %15 = sbr.rel (0) target = $region13
    $region12: #{tpu_custom_call.1} parent=1 // pred_region
      %s17 = ssub.s32 2048, 2048
      %18 = vsyncadd [#allocation3], %s17
      %s19 = sshll.u32 [#allocation2], 4
      %s20 = int_to_ptr.vmem [resolvable:$true] %s19
      %25 = dma.hbm_to_vmem [thread:$0]  %s2, 2048, %s20, [#allocation3], 64, 64, 4
    $region13: #{tpu_custom_call.1} parent=1 // pred_fallthru
      _
    // Predicated region
    $region14: #{tpu_custom_call.1} parent=1 // pred_check
      _
    $region15: #{tpu_custom_call.1} parent=1 // pred_check_branch
      %27 = sbr.rel (0) target = $region17
    $region16: #{tpu_custom_call.1} parent=1 // pred_region
      _
    $region17: #{tpu_custom_call.1} parent=1 // pred_fallthru
      _
    // Predicated region
    $region18: #{tpu_custom_call.1} parent=1 // pred_check
      _
    $region19: #{tpu_custom_call.1} parent=1 // pred_check_branch
      %29 = sbr.rel (0) target = $region21
    $region20: #{tpu_custom_call.1} parent=1 // pred_region
      %30 = dma.done [#allocation3], 2048
    $region21: #{tpu_custom_call.1} parent=1 // pred_fallthru
      _
    %v32 = vld [vmem:[%s3] sm:$0x1]
    %v33 = vld [vmem:[%s3 + $0x1] sm:$0x1]
    %v34 = vld [vmem:[%s3 + $0x2] sm:$0x1]
    %v35 = vld [vmem:[#allocation2] sm:$0xf]
    %v36 = vld [vmem:[#allocation2 + $0x4] sm:$0xf]
    %v37 = vld [vmem:[#allocation2 + $0x8] sm:$0xf]
    %v38 = vld [vmem:[#allocation2 + $0xc] sm:$0xf]
    %v39 = vld [vmem:[#allocation2 + $0x10] sm:$0xf]
    %v40 = vld [vmem:[#allocation2 + $0x14] sm:$0xf]
    %v41 = vld [vmem:[#allocation2 + $0x18] sm:$0xf]
    %v42 = vld [vmem:[#allocation2 + $0x1c] sm:$0xf]
    %v43 = vld [vmem:[#allocation2 + $0x20] sm:$0xf]
    %v44 = vld [vmem:[#allocation2 + $0x24] sm:$0xf]
    %v45 = vld [vmem:[#allocation2 + $0x28] sm:$0xf]
    %v46 = vld [vmem:[#allocation2 + $0x2c] sm:$0xf]
    %v47 = vld [vmem:[#allocation2 + $0x30] sm:$0xf]
    %v48 = vld [vmem:[#allocation2 + $0x34] sm:$0xf]
    %v49 = vld [vmem:[#allocation2 + $0x38] sm:$0xf]
    %v50 = vld [vmem:[#allocation2 + $0x3c] sm:$0xf]
    %v51 = vld [vmem:[#allocation2 + $0x40] sm:$0xf]
    %v52 = vld [vmem:[#allocation2 + $0x44] sm:$0xf]
    %v53 = vld [vmem:[#allocation2 + $0x48] sm:$0xf]
    %v54 = vld [vmem:[#allocation2 + $0x4c] sm:$0xf]
    %v55 = vld [vmem:[#allocation2 + $0x50] sm:$0xf]
    %v56 = vld [vmem:[#allocation2 + $0x54] sm:$0xf]
    %v57 = vld [vmem:[#allocation2 + $0x58] sm:$0xf]
    %v58 = vld [vmem:[#allocation2 + $0x5c] sm:$0xf]
    %v59 = vld [vmem:[#allocation2 + $0x60] sm:$0xf]
    %v60 = vld [vmem:[#allocation2 + $0x64] sm:$0xf]
    %v61 = vld [vmem:[#allocation2 + $0x68] sm:$0xf]
    %v62 = vld [vmem:[#allocation2 + $0x6c] sm:$0xf]
    %v63 = vld [vmem:[#allocation2 + $0x70] sm:$0xf]
    %v64 = vld [vmem:[#allocation2 + $0x74] sm:$0xf]
    %v65 = vld [vmem:[#allocation2 + $0x78] sm:$0xf]
    %v66 = vld [vmem:[#allocation2 + $0x7c] sm:$0xf]
    %v67 = vld [vmem:[%s0] sm:$0xff]
    %v68 = vld [vmem:[%s1] sm:$0xf]
    %v69 = vlaneseq
    %v70 = vshrl.u32 %v69, 7
    %v71 = vsub.s32 0, %v70
    %v72 = vrot.slane %v32, %v71
    %vm73 = vcmask 31744
    %v75 = vsel %vm73, %v67, 0
    %vm77 = vcmask 1043456
    %v79 = vsel %vm77, %v68, 0
    %81 = vmatprep.subr.mxu0 0.0
    %82 = vmatpush1.msra.mxu0 0.0
    %83 = vmatprep.subr.mxu0 0.0
    %84 = vmatpush1.msra.mxu0 0.0
    %85 = vmatprep.subr.mxu0 0.0
    %86 = vmatpush1.msra.mxu0 0.0
    %87 = vmatprep.subr.mxu0 0.0
    %88 = vmatpush1.msra.mxu0 0.0
    %89 = vmatprep.subr.mxu0 0.0
    %90 = vmatpush1.msra.mxu0 0.0
    %91 = vmatprep.subr.mxu0 0.0
    %92 = vmatpush1.msra.mxu0 0.0
    %93 = vmatprep.subr.mxu0 0.0
    %94 = vmatpush1.msra.mxu0 0.0
    %95 = vmatprep.subr.mxu0 0.0
    %96 = vmatpush1.msra.mxu0 0.0
    %97 = vmatprep.subr.mxu0 0.0
    %98 = vmatpush1.msra.mxu0 0.0
    %99 = vmatprep.subr.mxu0 0.0
    %100 = vmatpush1.msra.mxu0 0.0
    %101 = vmatprep.subr.mxu0 0.0
    %102 = vmatpush1.msra.mxu0 0.0
    %103 = vmatprep.subr.mxu0 0.0
    %104 = vmatpush1.msra.mxu0 0.0
    %105 = vmatprep.subr.mxu0 0.0
    %106 = vmatpush1.msra.mxu0 0.0
    %107 = vmatprep.subr.mxu0 0.0
    %108 = vmatpush1.msra.mxu0 0.0
    %109 = vmatprep.subr.mxu0 0.0
    %110 = vmatpush1.msra.mxu0 0.0
    %111 = vmatprep.subr.mxu0 0.0
    %112 = vmatpush1.msra.mxu0 %v79
    %113 = vmatprep.subr.mxu0 0.0
    %114 = vmatpush2.msra.mxu0 0.0
    %115 = vmatprep.subr.mxu0 0.0
    %116 = vmatpush2.msra.mxu0 0.0
    %117 = vmatprep.subr.mxu0 0.0
    %118 = vmatpush2.msra.mxu0 0.0
    %119 = vmatprep.subr.mxu0 0.0
    %120 = vmatpush2.msra.mxu0 0.0
    %121 = vmatprep.subr.mxu0 0.0
    %122 = vmatpush2.msra.mxu0 0.0
    %123 = vmatprep.subr.mxu0 0.0
    %124 = vmatpush2.msra.mxu0 0.0
    %125 = vmatprep.subr.mxu0 0.0
    %126 = vmatpush2.msra.mxu0 0.0
    %127 = vmatprep.subr.mxu0 0.0
    %128 = vmatpush2.msra.mxu0 0.0
    %129 = vmatprep.subr.mxu0 0.0
    %130 = vmatpush2.msra.mxu0 0.0
    %131 = vmatprep.subr.mxu0 0.0
    %132 = vmatpush2.msra.mxu0 0.0
    %133 = vmatprep.subr.mxu0 0.0
    %134 = vmatpush2.msra.mxu0 0.0
    %135 = vmatprep.subr.mxu0 0.0
    %136 = vmatpush2.msra.mxu0 0.0
    %137 = vmatprep.subr.mxu0 0.0
    %138 = vmatpush2.msra.mxu0 0.0
    %139 = vmatprep.subr.mxu0 0.0
    %140 = vmatpush2.msra.mxu0 0.0
    %141 = vmatprep.subr.mxu0 0.0
    %142 = vmatpush2.msra.mxu0 0.0
    %143 = vmatprep.subr.mxu0 0.0
    %144 = vmatpush2.msra.mxu0 0.0
    %145 = vmatprep.mubr.f32.mxu0 0.0
    %146 = vmatmul.mubr.f32.gmra.mxu0 %v75
    %v147 = vpop.f32.mrf.mxu0
    %v148 = vadd.f32 %v72, %v147
    %v149 = vpop.f32.mrf.mxu0
    %150 = vdwg.mxu0
    %v151 = vmax.f32 %v148, 0.0
    %v152 = vpack.c.bf16 %v151, %v151
    %v153 = vlaneseq
    %v154 = vshrl.u32 %v153, 7
    %v155 = vsub.s32 0, %v154
    %v156 = vrot.slane %v33, %v155
    %v173 = vunpack.c.l.b16 %v35
    %v174 = vunpack.c.l.b16 %v36
    %v175 = vunpack.c.l.b16 %v37
    %v176 = vunpack.c.l.b16 %v38
    %v177 = vunpack.c.l.b16 %v39
    %v178 = vunpack.c.l.b16 %v40
    %v179 = vunpack.c.l.b16 %v41
    %v180 = vunpack.c.l.b16 %v42
    %v181 = vunpack.c.l.b16 %v43
    %v182 = vunpack.c.l.b16 %v44
    %v183 = vunpack.c.l.b16 %v45
    %v184 = vunpack.c.l.b16 %v46
    %v185 = vunpack.c.l.b16 %v47
    %v186 = vunpack.c.l.b16 %v48
    %v187 = vunpack.c.l.b16 %v49
    %v188 = vunpack.c.l.b16 %v50
    %v189 = vpack.c.b16 %v174, %v173
    %v190 = vpack.c.b16 %v176, %v175
    %v191 = vpack.c.b16 %v178, %v177
    %v192 = vpack.c.b16 %v180, %v179
    %v193 = vpack.c.b16 %v182, %v181
    %v194 = vpack.c.b16 %v184, %v183
    %v195 = vpack.c.b16 %v186, %v185
    %v196 = vpack.c.b16 %v188, %v187
    %205 = vmatprep.subr.bf16.mxu0 0
    %206 = vmatpush1.bf16.msra.mxu0 %v196
    %207 = vmatprep.subr.bf16.mxu0 0
    %208 = vmatpush1.bf16.msra.mxu0 %v195
    %209 = vmatprep.subr.bf16.mxu0 0
    %210 = vmatpush1.bf16.msra.mxu0 %v194
    %211 = vmatprep.subr.bf16.mxu0 0
    %212 = vmatpush1.bf16.msra.mxu0 %v193
    %213 = vmatprep.subr.bf16.mxu0 0
    %214 = vmatpush1.bf16.msra.mxu0 %v192
    %215 = vmatprep.subr.bf16.mxu0 0
    %216 = vmatpush1.bf16.msra.mxu0 %v191
    %217 = vmatprep.subr.bf16.mxu0 0
    %218 = vmatpush1.bf16.msra.mxu0 %v190
    %219 = vmatprep.subr.bf16.mxu0 0
    %220 = vmatpush1.bf16.msra.mxu0 %v189
    %221 = vmatprep.subr.bf16.mxu0 0
    %222 = vmatpush2.bf16.msra.mxu0 0
    %223 = vmatprep.subr.bf16.mxu0 0
    %224 = vmatpush2.bf16.msra.mxu0 0
    %225 = vmatprep.subr.bf16.mxu0 0
    %226 = vmatpush2.bf16.msra.mxu0 0
    %227 = vmatprep.subr.bf16.mxu0 0
    %228 = vmatpush2.bf16.msra.mxu0 0
    %229 = vmatprep.subr.bf16.mxu0 0
    %230 = vmatpush2.bf16.msra.mxu0 0
    %231 = vmatprep.subr.bf16.mxu0 0
    %232 = vmatpush2.bf16.msra.mxu0 0
    %233 = vmatprep.subr.bf16.mxu0 0
    %234 = vmatpush2.bf16.msra.mxu0 0
    %235 = vmatprep.subr.bf16.mxu0 0
    %236 = vmatpush2.bf16.msra.mxu0 0
    %237 = vmatprep.mubr.bf16.mxu0 0
    %238 = vmatmul.mubr.bf16.gmra.mxu0 %v152
    %v239 = vpop.f32.mrf.mxu0
    %v240 = vadd.f32 %v156, %v239
    %v241 = vpop.f32.mrf.mxu0
    %v242 = vpop.f32.mrf.mxu0
    %v243 = vpop.f32.mrf.mxu0
    %244 = vdwg.mxu0
    %v245 = vmax.f32 %v240, 0.0
    %v246 = vpack.c.bf16 %v245, %v245
    %v247 = vlaneseq
    %v248 = vshrl.u32 %v247, 7
    %v249 = vsub.s32 0, %v248
    %v250 = vrot.slane %v34, %v249
    %v267 = vunpack.c.l.b16 %v51
    %v268 = vunpack.c.l.b16 %v52
    %v269 = vunpack.c.l.b16 %v53
    %v270 = vunpack.c.l.b16 %v54
    %v271 = vunpack.c.l.b16 %v55
    %v272 = vunpack.c.l.b16 %v56
    %v273 = vunpack.c.l.b16 %v57
    %v274 = vunpack.c.l.b16 %v58
    %v275 = vunpack.c.l.b16 %v59
    %v276 = vunpack.c.l.b16 %v60
    %v277 = vunpack.c.l.b16 %v61
    %v278 = vunpack.c.l.b16 %v62
    %v279 = vunpack.c.l.b16 %v63
    %v280 = vunpack.c.l.b16 %v64
    %v281 = vunpack.c.l.b16 %v65
    %v282 = vunpack.c.l.b16 %v66
    %v283 = vpack.c.b16 %v268, %v267
    %v284 = vpack.c.b16 %v270, %v269
    %v285 = vpack.c.b16 %v272, %v271
    %v286 = vpack.c.b16 %v274, %v273
    %v287 = vpack.c.b16 %v276, %v275
    %v288 = vpack.c.b16 %v278, %v277
    %v289 = vpack.c.b16 %v280, %v279
    %v290 = vpack.c.b16 %v282, %v281
    %299 = vmatprep.subr.bf16.mxu0 0
    %300 = vmatpush1.bf16.msra.mxu0 %v290
    %301 = vmatprep.subr.bf16.mxu0 0
    %302 = vmatpush1.bf16.msra.mxu0 %v289
    %303 = vmatprep.subr.bf16.mxu0 0
    %304 = vmatpush1.bf16.msra.mxu0 %v288
    %305 = vmatprep.subr.bf16.mxu0 0
    %306 = vmatpush1.bf16.msra.mxu0 %v287
    %307 = vmatprep.subr.bf16.mxu0 0
    %308 = vmatpush1.bf16.msra.mxu0 %v286
    %309 = vmatprep.subr.bf16.mxu0 0
    %310 = vmatpush1.bf16.msra.mxu0 %v285
    %311 = vmatprep.subr.bf16.mxu0 0
    %312 = vmatpush1.bf16.msra.mxu0 %v284
    %313 = vmatprep.subr.bf16.mxu0 0
    %314 = vmatpush1.bf16.msra.mxu0 %v283
    %315 = vmatprep.subr.bf16.mxu0 0
    %316 = vmatpush2.bf16.msra.mxu0 0
    %317 = vmatprep.subr.bf16.mxu0 0
    %318 = vmatpush2.bf16.msra.mxu0 0
    %319 = vmatprep.subr.bf16.mxu0 0
    %320 = vmatpush2.bf16.msra.mxu0 0
    %321 = vmatprep.subr.bf16.mxu0 0
    %322 = vmatpush2.bf16.msra.mxu0 0
    %323 = vmatprep.subr.bf16.mxu0 0
    %324 = vmatpush2.bf16.msra.mxu0 0
    %325 = vmatprep.subr.bf16.mxu0 0
    %326 = vmatpush2.bf16.msra.mxu0 0
    %327 = vmatprep.subr.bf16.mxu0 0
    %328 = vmatpush2.bf16.msra.mxu0 0
    %329 = vmatprep.subr.bf16.mxu0 0
    %330 = vmatpush2.bf16.msra.mxu0 0
    %331 = vmatprep.mubr.bf16.mxu0 0
    %332 = vmatmul.mubr.bf16.gmra.mxu0 %v246
    %v333 = vpop.f32.mrf.mxu0
    %v334 = vadd.f32 %v250, %v333
    %v335 = vpop.f32.mrf.mxu0
    %v336 = vpop.f32.mrf.mxu0
    %v337 = vpop.f32.mrf.mxu0
    %338 = vdwg.mxu0
    %vm339 = vcmask 15360
    %340 = vst.msk [vmem:[%s4] sm:$0xff] %vm339, %v334
    // Predicated region
    $region22: #{tpu_custom_call.1} parent=1 // pred_check
      _
    $region23: #{tpu_custom_call.1} parent=1 // pred_check_branch
      %342 = sbr.rel (0) target = $region25
    $region24: #{tpu_custom_call.1} parent=1 // pred_region
      _
    $region25: #{tpu_custom_call.1} parent=1 // pred_fallthru
      _
    // Predicated region
    $region26: #{tpu_custom_call.1} parent=1 // pred_check
      _
    $region27: #{tpu_custom_call.1} parent=1 // pred_check_branch
      %344 = sbr.rel (0) target = $region29
    $region28: #{tpu_custom_call.1} parent=1 // pred_region
      _
    $region29: #{tpu_custom_call.1} parent=1 // pred_fallthru
      _
    %345 = vsyncpa [#allocation3], 1

</llo_original>
